<compile_context>
chip_gen: v6e
topology: v6e:2x2x1
jax: 0.10.0
libtpu: 0.0.40
codegen_flags: <defaults>
</compile_context>

<pallas_src>
import functools

import jax
import jax.numpy as jnp
from jax.experimental import pallas as pl
from jax.experimental.pallas import tpu as pltpu

_LANES = 128
_MAX_SUBLANE_TILE = 256                   # 256 * 128 = 32768 pixels / grid step
_BLOCK_BYTE_BUDGET = 4 * 1024 * 1024      # one input block (Pallas double-buffers)


def _stable_sigmoid(x):
    """sigmoid(x) via exp(-|x|): never overflows, exact 0.5 at x == 0."""
    ex = jnp.exp(-jnp.abs(x))
    inv = 1.0 / (1.0 + ex)
    return jnp.where(x >= 0, inv, ex * inv)


def _dice_softmax_kernel(labels_ref, logits_ref, inter_ref, card_ref,
                         inter_acc, card_acc, *, num_classes):
    """Multi-class branch.

    Blocks: labels (1, S, 128) int, logits (1, C, S, 128) float.
    Outputs: per-(batch, split) inter/card (1, 1, C, 1) f32.
    """
    t = pl.program_id(2)

    @pl.when(t == 0)
    def _init():
        inter_acc[...] = jnp.zeros_like(inter_acc)
        card_acc[...] = jnp.zeros_like(card_acc)

    x = logits_ref[0].astype(jnp.float32)         # (C, S, 128)
    lbl = labels_ref[0].astype(jnp.int32)         # (S, 128)

    # softmax over the class (major) axis: elementwise across C vreg planes.
    m = jnp.max(x, axis=0, keepdims=True)         # (1, S, 128)
    e = jnp.exp(x - m)                            # (C, S, 128)   EUP
    denom = jnp.sum(e, axis=0, keepdims=True)     # (1, S, 128)
    inv = 1.0 / denom                             # exact divide (1/C of elems)
    probas = e * inv                              # (C, S, 128)

    # Per-class: reduce this tile over the pixel-sublane axis now, so the
    # persistent accumulators stay (C, 128) regardless of tile size.
    # Unrolled loop over C avoids a per-step (C, S, 128) class-id iota.
    for c in range(num_classes):
        p_c = probas[c]                                        # (S, 128)
        oh_c = (lbl == c).astype(jnp.float32)                  # (S, 128)
        inter_acc[c:c + 1, :] += jnp.sum(p_c * oh_c, axis=0, keepdims=True)
        card_acc[c:c + 1, :] += jnp.sum(p_c + oh_c, axis=0, keepdims=True)

    @pl.when(t == pl.num_programs(2) - 1)
    def _finalize():
        inter_ref[0, 0] = jnp.sum(inter_acc[...], axis=1, keepdims=True)  # (C,1)
        card_ref[0, 0] = jnp.sum(card_acc[...], axis=1, keepdims=True)


def _dice_sigmoid_kernel(labels_ref, logits_ref, stats_ref, acc):
    """Binary branch (num_classes == 1): foreground stats only.

    Blocks: labels (1, S, 128) int, logits (1, S, 128) float.
    Output stats (1, 1, 3, 1): [sum pos*fg, sum pos, count fg]; background
    intersection/cardinality are derived algebraically in JAX afterwards.
    """
    t = pl.program_id(2)

    @pl.when(t == 0)
    def _init():
        acc[...] = jnp.zeros_like(acc)

    x = logits_ref[0].astype(jnp.float32)         # (S, 128)
    lbl = labels_ref[0].astype(jnp.int32)         # (S, 128)

    pos = _stable_sigmoid(x)                      # (S, 128)
    fg = (lbl == 1).astype(jnp.float32)           # (S, 128)

    acc[0:1, :] += jnp.sum(pos * fg, axis=0, keepdims=True)
    acc[1:2, :] += jnp.sum(pos, axis=0, keepdims=True)
    acc[2:3, :] += jnp.sum(fg, axis=0, keepdims=True)

    @pl.when(t == pl.num_programs(2) - 1)
    def _finalize():
        stats_ref[0, 0] = jnp.sum(acc[...], axis=1, keepdims=True)        # (3,1)


def _tiling(n_pix, c_in_mem, logits_itemsize, label_itemsize):
    """Pick sublane tile, tile count, split count, padded pixel count."""
    n_rows = -(-n_pix // _LANES)                                # ceil(P / 128)
    bytes_per_row = _LANES * (c_in_mem * logits_itemsize + label_itemsize)
    s_cap = max(8, min(_MAX_SUBLANE_TILE, _BLOCK_BYTE_BUDGET // bytes_per_row))
    s_cap = max(8, (s_cap // 8) * 8)
    if n_rows <= s_cap:
        s_tile, n_tiles = n_rows, 1                             # full extent
    else:
        s_tile = s_cap
        n_tiles = -(-n_rows // s_tile)
    n_rows_p = n_tiles * s_tile
    n_pad = n_rows_p * _LANES - n_pix
    nsplit = 2 if (n_tiles >= 2 and n_tiles % 2 == 0) else 1    # v7x 2nd TC @ B=1
    return s_tile, n_tiles, nsplit, n_rows_p, n_pad


def _dice_loss_impl(true, logits, eps=1e-07):
    """Sørensen–Dice loss matching the PyTorch reference.

    true:   [B, 1, H, W] integer class labels (any int dtype; int8/int16 saves HBM)
    logits: [B, C, H, W] float logits (f32 or bf16; math is done in f32 in-kernel)
    """
    B, C, H, W = logits.shape
    P = H * W

    lbl = true
    if (not jnp.issubdtype(lbl.dtype, jnp.integer)) or lbl.dtype.itemsize > 4:
        lbl = lbl.astype(jnp.int32)
    pad_label = C if C > 1 else 2                 # matches no real class

    c_in_mem = C if C > 1 else 1
    s_tile, n_tiles, nsplit, n_rows_p, n_pad = _tiling(
        P, c_in_mem, logits.dtype.itemsize, lbl.dtype.itemsize)
    t_per_split = n_tiles // nsplit

    labels_flat = lbl.reshape(B, P)
    if n_pad:
        labels_flat = jnp.pad(labels_flat, ((0, 0), (0, n_pad)),
                              constant_values=pad_label)
    labels_3d = labels_flat.reshape(B, n_rows_p, _LANES)

    block_bytes = s_tile * _LANES * (c_in_mem * logits.dtype.itemsize
                                     + labels_3d.dtype.itemsize)
    vmem_limit = int(min(64 * 1024 * 1024,
                         max(8 * 1024 * 1024, 2 * block_bytes + (4 << 20))))
    cparams = pltpu.CompilerParams(
        dimension_semantics=("parallel", "parallel", "arbitrary"),
        vmem_limit_bytes=vmem_limit)

    lbl_spec = pl.BlockSpec((1, s_tile, _LANES),
                            lambda b, s, t: (b, s * t_per_split + t, 0))

    if C == 1:
        # ---- binary / sigmoid branch -------------------------------------
        logits_flat = logits.reshape(B, P)
        if n_pad:
            logits_flat = jnp.pad(logits_flat, ((0, 0), (0, n_pad)),
                                  constant_values=0.0)
        logits_3d = logits_flat.reshape(B, n_rows_p, _LANES)

        stats = pl.pallas_call(
            _dice_sigmoid_kernel,
            out_shape=jax.ShapeDtypeStruct((B, nsplit, 3, 1), jnp.float32),
            grid_spec=pltpu.PrefetchScalarGridSpec(
                num_scalar_prefetch=0,
                grid=(B, nsplit, t_per_split),
                in_specs=[
                    lbl_spec,
                    pl.BlockSpec((1, s_tile, _LANES),
                                 lambda b, s, t: (b, s * t_per_split + t, 0)),
                ],
                out_specs=pl.BlockSpec((1, 1, 3, 1),
                                       lambda b, s, t: (b, s, 0, 0)),
                scratch_shapes=[pltpu.VMEM((3, _LANES), jnp.float32)],
            ),
            compiler_params=cparams,
        )(labels_3d, logits_3d)

        s = jnp.sum(stats[..., 0], axis=(0, 1))                 # (3,)
        inter_fg = s[0]
        sum_pos = s[1] - 0.5 * (B * n_pad)        # sigmoid(0)=0.5 on padding
        count_fg = s[2]
        n_valid = float(B * P)
        count_bg = n_valid - count_fg
        inter_bg = count_bg - (sum_pos - inter_fg)
        card_fg = sum_pos + count_fg
        card_bg = (n_valid - sum_pos) + count_bg
        inter = jnp.stack([inter_fg, inter_bg])
        card = jnp.stack([card_fg, card_bg])
    else:
        # ---- multi-class / softmax branch --------------------------------
        logits_flat = logits.reshape(B, C, P)
        if n_pad:
            logits_flat = jnp.pad(logits_flat, ((0, 0), (0, 0), (0, n_pad)),
                                  constant_values=0.0)
        logits_4d = logits_flat.reshape(B, C, n_rows_p, _LANES)

        kernel = functools.partial(_dice_softmax_kernel, num_classes=C)
        inter_p, card_p = pl.pallas_call(
            kernel,
            out_shape=(
                jax.ShapeDtypeStruct((B, nsplit, C, 1), jnp.float32),
                jax.ShapeDtypeStruct((B, nsplit, C, 1), jnp.float32),
            ),
            grid_spec=pltpu.PrefetchScalarGridSpec(
                num_scalar_prefetch=0,
                grid=(B, nsplit, t_per_split),
                in_specs=[
                    lbl_spec,
                    pl.BlockSpec((1, C, s_tile, _LANES),
                                 lambda b, s, t: (b, 0, s * t_per_split + t, 0)),
                ],
                out_specs=[
                    pl.BlockSpec((1, 1, C, 1), lambda b, s, t: (b, s, 0, 0)),
                    pl.BlockSpec((1, 1, C, 1), lambda b, s, t: (b, s, 0, 0)),
                ],
                scratch_shapes=[
                    pltpu.VMEM((C, _LANES), jnp.float32),
                    pltpu.VMEM((C, _LANES), jnp.float32),
                ],
            ),
            compiler_params=cparams,
        )(labels_3d, logits_4d)

        inter = jnp.sum(inter_p[..., 0], axis=(0, 1))           # (C,)
        card = jnp.sum(card_p[..., 0], axis=(0, 1))
        if n_pad:
            # padded pixels: softmax(0) = 1/C per class, one-hot = 0 -> exact fix
            card = card - (B * n_pad) / float(C)

    dice = jnp.mean(2.0 * inter / (card + eps))
    return 1.0 - dice


dice_loss_pallas = jax.jit(_dice_loss_impl)


def dice_loss_ref(true, logits, eps=1e-07):
    """Pure-JAX mirror of the PyTorch reference (both branches)."""
    B, C, H, W = logits.shape
    t = true.reshape(B, H, W).astype(jnp.int32)
    if C == 1:
        oh = jax.nn.one_hot(t, 2, dtype=jnp.float32)             # (B,H,W,2)
        oh = jnp.transpose(oh, (0, 3, 1, 2))                     # (B,2,H,W)
        true_1_hot = jnp.concatenate([oh[:, 1:2], oh[:, 0:1]], axis=1)
        pos = jax.nn.sigmoid(logits.astype(jnp.float32))
        probas = jnp.concatenate([pos, 1.0 - pos], axis=1)
    else:
        oh = jax.nn.one_hot(t, C, dtype=jnp.float32)
        true_1_hot = jnp.transpose(oh, (0, 3, 1, 2))             # (B,C,H,W)
        probas = jax.nn.softmax(logits.astype(jnp.float32), axis=1)
    dims = (0, 2, 3)
    intersection = jnp.sum(probas * true_1_hot, axis=dims)
    cardinality = jnp.sum(probas + true_1_hot, axis=dims)
    dice = jnp.mean(2.0 * intersection / (cardinality + eps))
    return 1.0 - dice


if __name__ == "__main__":
    key = jax.random.PRNGKey(0)
    k1, k2, k3, k4, k5, k6 = jax.random.split(key, 6)

    # 1) multi-class (softmax) branch: f32 logits, int8 labels (narrow-label contract)
    B, C, H, W = 2, 4, 16, 16
    logits = jax.random.normal(k1, (B, C, H, W), dtype=jnp.float32)
    true_i32 = jax.random.randint(k2, (B, 1, H, W), 0, C, dtype=jnp.int32)
    true_i8 = true_i32.astype(jnp.int8)
    loss = jax.block_until_ready(dice_loss_pallas(true_i8, logits))
    ref = dice_loss_ref(true_i32, logits)
    assert jnp.allclose(loss, ref, atol=1e-4, rtol=1e-4), (loss, ref)

    # 2) multi-class with bf16 logits at the kernel boundary (f32 math in-kernel)
    logits_bf16 = logits.astype(jnp.bfloat16)
    loss_bf = jax.block_until_ready(dice_loss_pallas(true_i8, logits_bf16))
    ref_bf = dice_loss_ref(true_i32, logits_bf16.astype(jnp.float32))
    assert jnp.allclose(loss_bf, ref_bf, atol=1e-4, rtol=1e-4), (loss_bf, ref_bf)

    # 3) binary (sigmoid) branch, num_classes == 1
    logits_b = jax.random.normal(k3, (B, 1, H, W), dtype=jnp.float32)
    true_b = jax.random.randint(k4, (B, 1, H, W), 0, 2, dtype=jnp.int32)
    loss_b = jax.block_until_ready(dice_loss_pallas(true_b, logits_b))
    ref_b = dice_loss_ref(true_b, logits_b)
    assert jnp.allclose(loss_b, ref_b, atol=1e-4, rtol=1e-4), (loss_b, ref_b)

    # 4) ragged spatial size (H*W % 128 != 0) exercises pad + exact correction
    Hr, Wr = 10, 10
    logits_r = jax.random.normal(k5, (B, C, Hr, Wr), dtype=jnp.float32)
    true_r = jax.random.randint(k6, (B, 1, Hr, Wr), 0, C, dtype=jnp.int32)
    loss_r = jax.block_until_ready(dice_loss_pallas(true_r, logits_r))
    ref_r = dice_loss_ref(true_r, logits_r)
    assert jnp.allclose(loss_r, ref_r, atol=1e-4, rtol=1e-4), (loss_r, ref_r)

    print("KERNEL_OK")
</pallas_src>

<mosaic_0001>
module attributes {stable_mosaic.version = 11 : i64} {
  func.func @_dice_softmax_kernel(%arg0: i32, %arg1: i32, %arg2: i32, %arg3: memref<1x2x128xi8, #tpu.memory_space<vmem>>, %arg4: memref<1x4x2x128xf32, #tpu.memory_space<vmem>>, %arg5: memref<1x1x4x1xf32, #tpu.memory_space<vmem>>, %arg6: memref<1x1x4x1xf32, #tpu.memory_space<vmem>>, %arg7: memref<4x128xf32, #tpu.memory_space<vmem>>, %arg8: memref<4x128xf32, #tpu.memory_space<vmem>>) attributes {dimension_semantics = [#tpu.dimension_semantics<parallel>, #tpu.dimension_semantics<parallel>, #tpu.dimension_semantics<arbitrary>], iteration_bounds = array<i64: 2, 1, 1>, scalar_prefetch = 0 : i64, scratch_operands = 2 : i64, tpu.core_type = #tpu.core_type<tc>, window_params = [{transform_indices = @transform_0, window_bounds = array<i64: 1, 2, 128>}, {transform_indices = @transform_1, window_bounds = array<i64: 1, 4, 2, 128>}, {transform_indices = @transform_2, window_bounds = array<i64: 1, 1, 4, 1>}, {transform_indices = @transform_3, window_bounds = array<i64: 1, 1, 4, 1>}]} {
    %c0_i32 = arith.constant 0 : i32
    %0 = arith.cmpi eq, %arg2, %c0_i32 : i32
    %1 = arith.extui %0 : i1 to i32
    %c0_i32_0 = arith.constant 0 : i32
    %2 = arith.cmpi ne, %1, %c0_i32_0 : i32
    scf.if %2 {
      %cst_49 = arith.constant 0.000000e+00 : f32
      %94 = vector.broadcast %cst_49 : f32 to vector<4x128xf32>
      %c0_50 = arith.constant 0 : index
      %c0_51 = arith.constant 0 : index
      %95 = vector.load %arg7[%c0_50, %c0_51] : memref<4x128xf32, #tpu.memory_space<vmem>>, vector<4x128xf32>
      tpu.vector_store %arg7[%c0_50, %c0_51], %94 {strides = array<i32>} : memref<4x128xf32, #tpu.memory_space<vmem>>, vector<4x128xf32>,
      %cst_52 = arith.constant 0.000000e+00 : f32
      %96 = vector.broadcast %cst_52 : f32 to vector<4x128xf32>
      %c0_53 = arith.constant 0 : index
      %c0_54 = arith.constant 0 : index
      %97 = vector.load %arg8[%c0_53, %c0_54] : memref<4x128xf32, #tpu.memory_space<vmem>>, vector<4x128xf32>
      tpu.vector_store %arg8[%c0_53, %c0_54], %96 {strides = array<i32>} : memref<4x128xf32, #tpu.memory_space<vmem>>, vector<4x128xf32>,
    } else {
    }
    %c0 = arith.constant 0 : index
    %c0_1 = arith.constant 0 : index
    %c0_2 = arith.constant 0 : index
    %c0_3 = arith.constant 0 : index
    %3 = vector.load %arg4[%c0, %c0_1, %c0_2, %c0_3] : memref<1x4x2x128xf32, #tpu.memory_space<vmem>>, vector<1x4x2x128xf32>
    %4 = vector.shape_cast %3 : vector<1x4x2x128xf32> to vector<4x2x128xf32>
    %c0_4 = arith.constant 0 : index
    %c0_5 = arith.constant 0 : index
    %c0_6 = arith.constant 0 : index
    %5 = vector.load %arg3[%c0_4, %c0_5, %c0_6] : memref<1x2x128xi8, #tpu.memory_space<vmem>>, vector<1x2x128xi8>
    %6 = vector.shape_cast %5 : vector<1x2x128xi8> to vector<2x128xi8>
    %7 = arith.extsi %6 : vector<2x128xi8> to vector<2x128xi32>
    %cst = arith.constant dense<0xFF800000> : vector<2x128xf32>
    %8 = vector.multi_reduction <maximumf>, %4, %cst [0] : vector<4x2x128xf32> to vector<2x128xf32>
    %9 = vector.shape_cast %8 : vector<2x128xf32> to vector<1x2x128xf32>
    %10 = vector.broadcast %9 : vector<1x2x128xf32> to vector<4x2x128xf32>
    %11 = arith.subf %4, %10 : vector<4x2x128xf32>
    %12 = math.exp %11 : vector<4x2x128xf32>
    %cst_7 = arith.constant dense<0.000000e+00> : vector<2x128xf32>
    %13 = vector.multi_reduction <add>, %12, %cst_7 [0] : vector<4x2x128xf32> to vector<2x128xf32>
    %14 = vector.shape_cast %13 : vector<2x128xf32> to vector<1x2x128xf32>
    %cst_8 = arith.constant 1.000000e+00 : f32
    %15 = vector.broadcast %cst_8 : f32 to vector<1x2x128xf32>
    %16 = arith.divf %15, %14 : vector<1x2x128xf32>
    %17 = vector.broadcast %16 : vector<1x2x128xf32> to vector<4x2x128xf32>
    %18 = arith.mulf %12, %17 : vector<4x2x128xf32>
    %19 = vector.extract_strided_slice %18 {offsets = [0, 0, 0], sizes = [1, 2, 128], strides = [1, 1, 1]} : vector<4x2x128xf32> to vector<1x2x128xf32>
    %20 = vector.shape_cast %19 : vector<1x2x128xf32> to vector<2x128xf32>
    %c0_i32_9 = arith.constant 0 : i32
    %21 = vector.broadcast %c0_i32_9 : i32 to vector<2x128xi32>
    %22 = arith.cmpi eq, %7, %21 : vector<2x128xi32>
    %23 = arith.extui %22 : vector<2x128xi1> to vector<2x128xi32>
    %24 = arith.sitofp %23 : vector<2x128xi32> to vector<2x128xf32>
    %c0_10 = arith.constant 0 : index
    %c0_11 = arith.constant 0 : index
    %25 = vector.load %arg7[%c0_10, %c0_11] : memref<4x128xf32, #tpu.memory_space<vmem>>, vector<1x128xf32>
    %26 = arith.mulf %20, %24 : vector<2x128xf32>
    %cst_12 = arith.constant dense<0.000000e+00> : vector<128xf32>
    %27 = vector.multi_reduction <add>, %26, %cst_12 [0] : vector<2x128xf32> to vector<128xf32>
    %28 = vector.shape_cast %27 : vector<128xf32> to vector<1x128xf32>
    %29 = arith.addf %25, %28 : vector<1x128xf32>
    %c0_13 = arith.constant 0 : index
    %c0_14 = arith.constant 0 : index
    %30 = vector.load %arg7[%c0_13, %c0_14] : memref<4x128xf32, #tpu.memory_space<vmem>>, vector<1x128xf32>
    tpu.vector_store %arg7[%c0_13, %c0_14], %29 {strides = array<i32>} : memref<4x128xf32, #tpu.memory_space<vmem>>, vector<1x128xf32>,
    %c0_15 = arith.constant 0 : index
    %c0_16 = arith.constant 0 : index
    %31 = vector.load %arg8[%c0_15, %c0_16] : memref<4x128xf32, #tpu.memory_space<vmem>>, vector<1x128xf32>
    %32 = arith.addf %20, %24 : vector<2x128xf32>
    %cst_17 = arith.constant dense<0.000000e+00> : vector<128xf32>
    %33 = vector.multi_reduction <add>, %32, %cst_17 [0] : vector<2x128xf32> to vector<128xf32>
    %34 = vector.shape_cast %33 : vector<128xf32> to vector<1x128xf32>
    %35 = arith.addf %31, %34 : vector<1x128xf32>
    %c0_18 = arith.constant 0 : index
    %c0_19 = arith.constant 0 : index
    %36 = vector.load %arg8[%c0_18, %c0_19] : memref<4x128xf32, #tpu.memory_space<vmem>>, vector<1x128xf32>
    tpu.vector_store %arg8[%c0_18, %c0_19], %35 {strides = array<i32>} : memref<4x128xf32, #tpu.memory_space<vmem>>, vector<1x128xf32>,
    %37 = vector.extract_strided_slice %18 {offsets = [1, 0, 0], sizes = [1, 2, 128], strides = [1, 1, 1]} : vector<4x2x128xf32> to vector<1x2x128xf32>
    %38 = vector.shape_cast %37 : vector<1x2x128xf32> to vector<2x128xf32>
    %c1_i32 = arith.constant 1 : i32
    %39 = vector.broadcast %c1_i32 : i32 to vector<2x128xi32>
    %40 = arith.cmpi eq, %7, %39 : vector<2x128xi32>
    %41 = arith.extui %40 : vector<2x128xi1> to vector<2x128xi32>
    %42 = arith.sitofp %41 : vector<2x128xi32> to vector<2x128xf32>
    %c1 = arith.constant 1 : index
    %c0_20 = arith.constant 0 : index
    %43 = vector.load %arg7[%c1, %c0_20] : memref<4x128xf32, #tpu.memory_space<vmem>>, vector<1x128xf32>
    %44 = arith.mulf %38, %42 : vector<2x128xf32>
    %cst_21 = arith.constant dense<0.000000e+00> : vector<128xf32>
    %45 = vector.multi_reduction <add>, %44, %cst_21 [0] : vector<2x128xf32> to vector<128xf32>
    %46 = vector.shape_cast %45 : vector<128xf32> to vector<1x128xf32>
    %47 = arith.addf %43, %46 : vector<1x128xf32>
    %c1_22 = arith.constant 1 : index
    %c0_23 = arith.constant 0 : index
    %48 = vector.load %arg7[%c1_22, %c0_23] : memref<4x128xf32, #tpu.memory_space<vmem>>, vector<1x128xf32>
    tpu.vector_store %arg7[%c1_22, %c0_23], %47 {strides = array<i32>} : memref<4x128xf32, #tpu.memory_space<vmem>>, vector<1x128xf32>,
    %c1_24 = arith.constant 1 : index
    %c0_25 = arith.constant 0 : index
    %49 = vector.load %arg8[%c1_24, %c0_25] : memref<4x128xf32, #tpu.memory_space<vmem>>, vector<1x128xf32>
    %50 = arith.addf %38, %42 : vector<2x128xf32>
    %cst_26 = arith.constant dense<0.000000e+00> : vector<128xf32>
    %51 = vector.multi_reduction <add>, %50, %cst_26 [0] : vector<2x128xf32> to vector<128xf32>
    %52 = vector.shape_cast %51 : vector<128xf32> to vector<1x128xf32>
    %53 = arith.addf %49, %52 : vector<1x128xf32>
    %c1_27 = arith.constant 1 : index
    %c0_28 = arith.constant 0 : index
    %54 = vector.load %arg8[%c1_27, %c0_28] : memref<4x128xf32, #tpu.memory_space<vmem>>, vector<1x128xf32>
    tpu.vector_store %arg8[%c1_27, %c0_28], %53 {strides = array<i32>} : memref<4x128xf32, #tpu.memory_space<vmem>>, vector<1x128xf32>,
    %55 = vector.extract_strided_slice %18 {offsets = [2, 0, 0], sizes = [1, 2, 128], strides = [1, 1, 1]} : vector<4x2x128xf32> to vector<1x2x128xf32>
    %56 = vector.shape_cast %55 : vector<1x2x128xf32> to vector<2x128xf32>
    %c2_i32 = arith.constant 2 : i32
    %57 = vector.broadcast %c2_i32 : i32 to vector<2x128xi32>
    %58 = arith.cmpi eq, %7, %57 : vector<2x128xi32>
    %59 = arith.extui %58 : vector<2x128xi1> to vector<2x128xi32>
    %60 = arith.sitofp %59 : vector<2x128xi32> to vector<2x128xf32>
    %c2 = arith.constant 2 : index
    %c0_29 = arith.constant 0 : index
    %61 = vector.load %arg7[%c2, %c0_29] : memref<4x128xf32, #tpu.memory_space<vmem>>, vector<1x128xf32>
    %62 = arith.mulf %56, %60 : vector<2x128xf32>
    %cst_30 = arith.constant dense<0.000000e+00> : vector<128xf32>
    %63 = vector.multi_reduction <add>, %62, %cst_30 [0] : vector<2x128xf32> to vector<128xf32>
    %64 = vector.shape_cast %63 : vector<128xf32> to vector<1x128xf32>
    %65 = arith.addf %61, %64 : vector<1x128xf32>
    %c2_31 = arith.constant 2 : index
    %c0_32 = arith.constant 0 : index
    %66 = vector.load %arg7[%c2_31, %c0_32] : memref<4x128xf32, #tpu.memory_space<vmem>>, vector<1x128xf32>
    tpu.vector_store %arg7[%c2_31, %c0_32], %65 {strides = array<i32>} : memref<4x128xf32, #tpu.memory_space<vmem>>, vector<1x128xf32>,
    %c2_33 = arith.constant 2 : index
    %c0_34 = arith.constant 0 : index
    %67 = vector.load %arg8[%c2_33, %c0_34] : memref<4x128xf32, #tpu.memory_space<vmem>>, vector<1x128xf32>
    %68 = arith.addf %56, %60 : vector<2x128xf32>
    %cst_35 = arith.constant dense<0.000000e+00> : vector<128xf32>
    %69 = vector.multi_reduction <add>, %68, %cst_35 [0] : vector<2x128xf32> to vector<128xf32>
    %70 = vector.shape_cast %69 : vector<128xf32> to vector<1x128xf32>
    %71 = arith.addf %67, %70 : vector<1x128xf32>
    %c2_36 = arith.constant 2 : index
    %c0_37 = arith.constant 0 : index
    %72 = vector.load %arg8[%c2_36, %c0_37] : memref<4x128xf32, #tpu.memory_space<vmem>>, vector<1x128xf32>
    tpu.vector_store %arg8[%c2_36, %c0_37], %71 {strides = array<i32>} : memref<4x128xf32, #tpu.memory_space<vmem>>, vector<1x128xf32>,
    %73 = vector.extract_strided_slice %18 {offsets = [3, 0, 0], sizes = [1, 2, 128], strides = [1, 1, 1]} : vector<4x2x128xf32> to vector<1x2x128xf32>
    %74 = vector.shape_cast %73 : vector<1x2x128xf32> to vector<2x128xf32>
    %c3_i32 = arith.constant 3 : i32
    %75 = vector.broadcast %c3_i32 : i32 to vector<2x128xi32>
    %76 = arith.cmpi eq, %7, %75 : vector<2x128xi32>
    %77 = arith.extui %76 : vector<2x128xi1> to vector<2x128xi32>
    %78 = arith.sitofp %77 : vector<2x128xi32> to vector<2x128xf32>
    %c3 = arith.constant 3 : index
    %c0_38 = arith.constant 0 : index
    %79 = vector.load %arg7[%c3, %c0_38] : memref<4x128xf32, #tpu.memory_space<vmem>>, vector<1x128xf32>
    %80 = arith.mulf %74, %78 : vector<2x128xf32>
    %cst_39 = arith.constant dense<0.000000e+00> : vector<128xf32>
    %81 = vector.multi_reduction <add>, %80, %cst_39 [0] : vector<2x128xf32> to vector<128xf32>
    %82 = vector.shape_cast %81 : vector<128xf32> to vector<1x128xf32>
    %83 = arith.addf %79, %82 : vector<1x128xf32>
    %c3_40 = arith.constant 3 : index
    %c0_41 = arith.constant 0 : index
    %84 = vector.load %arg7[%c3_40, %c0_41] : memref<4x128xf32, #tpu.memory_space<vmem>>, vector<1x128xf32>
    tpu.vector_store %arg7[%c3_40, %c0_41], %83 {strides = array<i32>} : memref<4x128xf32, #tpu.memory_space<vmem>>, vector<1x128xf32>,
    %c3_42 = arith.constant 3 : index
    %c0_43 = arith.constant 0 : index
    %85 = vector.load %arg8[%c3_42, %c0_43] : memref<4x128xf32, #tpu.memory_space<vmem>>, vector<1x128xf32>
    %86 = arith.addf %74, %78 : vector<2x128xf32>
    %cst_44 = arith.constant dense<0.000000e+00> : vector<128xf32>
    %87 = vector.multi_reduction <add>, %86, %cst_44 [0] : vector<2x128xf32> to vector<128xf32>
    %88 = vector.shape_cast %87 : vector<128xf32> to vector<1x128xf32>
    %89 = arith.addf %85, %88 : vector<1x128xf32>
    %c3_45 = arith.constant 3 : index
    %c0_46 = arith.constant 0 : index
    %90 = vector.load %arg8[%c3_45, %c0_46] : memref<4x128xf32, #tpu.memory_space<vmem>>, vector<1x128xf32>
    tpu.vector_store %arg8[%c3_45, %c0_46], %89 {strides = array<i32>} : memref<4x128xf32, #tpu.memory_space<vmem>>, vector<1x128xf32>,
    %c0_i32_47 = arith.constant 0 : i32
    %91 = arith.cmpi eq, %arg2, %c0_i32_47 : i32
    %92 = arith.extui %91 : i1 to i32
    %c0_i32_48 = arith.constant 0 : i32
    %93 = arith.cmpi ne, %92, %c0_i32_48 : i32
    scf.if %93 {
      %c0_49 = arith.constant 0 : index
      %c0_50 = arith.constant 0 : index
      %94 = vector.load %arg7[%c0_49, %c0_50] : memref<4x128xf32, #tpu.memory_space<vmem>>, vector<4x128xf32>
      %cst_51 = arith.constant dense<0.000000e+00> : vector<4xf32>
      %95 = vector.multi_reduction <add>, %94, %cst_51 [1] : vector<4x128xf32> to vector<4xf32>
      %96 = vector.shape_cast %95 : vector<4xf32> to vector<4x1xf32>
      %c0_52 = arith.constant 0 : index
      %c0_53 = arith.constant 0 : index
      %c0_54 = arith.constant 0 : index
      %c0_55 = arith.constant 0 : index
      %97 = vector.load %arg5[%c0_52, %c0_53, %c0_54, %c0_55] : memref<1x1x4x1xf32, #tpu.memory_space<vmem>>, vector<1x1x4x1xf32>
      %98 = vector.shape_cast %97 : vector<1x1x4x1xf32> to vector<4x1xf32>
      %99 = vector.shape_cast %96 : vector<4x1xf32> to vector<1x1x4x1xf32>
      tpu.vector_store %arg5[%c0_52, %c0_53, %c0_54, %c0_55], %99 {strides = array<i32>} : memref<1x1x4x1xf32, #tpu.memory_space<vmem>>, vector<1x1x4x1xf32>,
      %c0_56 = arith.constant 0 : index
      %c0_57 = arith.constant 0 : index
      %100 = vector.load %arg8[%c0_56, %c0_57] : memref<4x128xf32, #tpu.memory_space<vmem>>, vector<4x128xf32>
      %cst_58 = arith.constant dense<0.000000e+00> : vector<4xf32>
      %101 = vector.multi_reduction <add>, %100, %cst_58 [1] : vector<4x128xf32> to vector<4xf32>
      %102 = vector.shape_cast %101 : vector<4xf32> to vector<4x1xf32>
      %c0_59 = arith.constant 0 : index
      %c0_60 = arith.constant 0 : index
      %c0_61 = arith.constant 0 : index
      %c0_62 = arith.constant 0 : index
      %103 = vector.load %arg6[%c0_59, %c0_60, %c0_61, %c0_62] : memref<1x1x4x1xf32, #tpu.memory_space<vmem>>, vector<1x1x4x1xf32>
      %104 = vector.shape_cast %103 : vector<1x1x4x1xf32> to vector<4x1xf32>
      %105 = vector.shape_cast %102 : vector<4x1xf32> to vector<1x1x4x1xf32>
      tpu.vector_store %arg6[%c0_59, %c0_60, %c0_61, %c0_62], %105 {strides = array<i32>} : memref<1x1x4x1xf32, #tpu.memory_space<vmem>>, vector<1x1x4x1xf32>,
    } else {
    }
    return
  }
  func.func @transform_0(%arg0: i32, %arg1: i32, %arg2: i32) -> (i32, i32, i32) {
    %c1_i32 = arith.constant 1 : i32
    %0 = arith.muli %arg1, %c1_i32 : i32
    %1 = arith.addi %0, %arg2 : i32
    %c0_i32 = arith.constant 0 : i32
    %c0_i32_0 = arith.constant 0 : i32
    return %arg0, %1, %c0_i32 : i32, i32, i32
  }
  func.func @transform_1(%arg0: i32, %arg1: i32, %arg2: i32) -> (i32, i32, i32, i32) {
    %c1_i32 = arith.constant 1 : i32
    %0 = arith.muli %arg1, %c1_i32 : i32
    %1 = arith.addi %0, %arg2 : i32
    %c0_i32 = arith.constant 0 : i32
    %c0_i32_0 = arith.constant 0 : i32
    %c0_i32_1 = arith.constant 0 : i32
    return %arg0, %c0_i32, %1, %c0_i32_0 : i32, i32, i32, i32
  }
  func.func @transform_2(%arg0: i32, %arg1: i32, %arg2: i32) -> (i32, i32, i32, i32) {
    %c0_i32 = arith.constant 0 : i32
    %c0_i32_0 = arith.constant 0 : i32
    %c0_i32_1 = arith.constant 0 : i32
    return %arg0, %arg1, %c0_i32, %c0_i32_0 : i32, i32, i32, i32
  }
  func.func @transform_3(%arg0: i32, %arg1: i32, %arg2: i32) -> (i32, i32, i32, i32) {
    %c0_i32 = arith.constant 0 : i32
    %c0_i32_0 = arith.constant 0 : i32
    %c0_i32_1 = arith.constant 0 : i32
    return %arg0, %arg1, %c0_i32, %c0_i32_0 : i32, i32, i32, i32
  }
}

</mosaic_0001>

<llo_original>
// kernel: _dice_loss_impl.1
$region0: #{_dice_loss_impl.1}
  #allocation0 [shape = 'u32[]', space=smem, size = 0x4, offset = 0x4, fixed_abs, tag = 'smem constant byte address 0x4 - core index']
  #allocation1 [shape = 'u32[144,128]{1,0:T(1,128)}', space=vmem, size = 0x12000, scoped, tag = 'internal scratch']
  #allocation2 [shape = 'f32[4,128]{1,0:T(4,128)}', space=vmem, size = 0x800, scoped, tag = 'scratch operand']
  #allocation3 [shape = 'f32[4,128]{1,0:T(4,128)}', space=vmem, size = 0x800, scoped, tag = 'scratch operand']
  %s0 = inlined_call_operand.vmem [shape: s8[2,2,128], index: 0, kind: input, shape index: {}]
  %s1 = inlined_call_operand.vmem [shape: f32[2,4,2,128], index: 1, kind: input, shape index: {}]
  %s2 = inlined_call_operand.vmem [shape: f32[2,1,4,1], index: 2, kind: output, shape index: {0}]
  %s3 = inlined_call_operand.vmem [shape: f32[2,1,4,1], index: 3, kind: output, shape index: {1}]
  %4 = xla_tuple %s2, %s3
  %s5 = sld [smem:[#allocation0]]
  $region57: #{_dice_loss_impl.1} parent=0
    _
  %s7 = ssub.s32 1, %s5
  %s8 = scalar_select 0, %s7, %s5
  loop: start=0, step=1, limit=4
  $region2: #{_dice_loss_impl.1} parent=0 // loop_pre_header
    _
  $region3: #{_dice_loss_impl.1} parent=0 // loop_header
    %s10 = sphi 0, %s14
    %p11 = scmp.ge.s32.totalorder %s10, 4
    %s17 = sphi 0, %s36
    %s18 = sphi 0, %s32
    %s19 = sphi 0, %s28
    %s20 = sphi 0, %s17
    %s21 = sphi 0, %s18
    %s22 = sphi 0, %s19
    %s23 = sphi 0, %s20
    %s24 = sphi 0, %s21
    %s25 = sphi 0, %s22
    %s43 = sphi 0, %s45
    %s46 = sphi 0, %s43
    %s47 = sphi 0, %s46
    %s63 = sphi 0, %s47
    %s73 = sphi 0, %s75
    %s76 = sphi 0, %s73
    %s77 = sphi 0, %s76
    %s93 = sphi 0, %s77
    %s101 = sphi 0, %s103
    %s104 = sphi 0, %s101
    %s105 = sphi 0, %s104
    %s121 = sphi 0, %s105
    %s129 = sphi 0, %s131
    %s132 = sphi 0, %s129
    %s133 = sphi 0, %s132
    %s149 = sphi 0, %s133
  $region4: #{_dice_loss_impl.1} parent=0 // loop_header_branch
    %13 = sbr.rel (%p11) target = $region8
  $region5: #{_dice_loss_impl.1} parent=0 // loop_body
    %s15 = ssub.s32 %s10, 1
    %s16 = ssub.s32 %s10, 2
    %s26 = sadd.s32 1, %s19
    %p27 = scmp.ge.s32.totalorder %s26, 1
    %s28 = scalar_select %p27, 0, %s26
    %s29 = sadd.s32 1, %s18
    %s30 = scalar_select %p27, %s29, %s18
    %p31 = scmp.ge.s32.totalorder %s30, 1
    %s32 = scalar_select %p31, 0, %s30
    %s33 = sadd.s32 1, %s17
    %s34 = scalar_select %p31, %s33, %s17
    %p35 = scmp.ge.s32.totalorder %s34, 2
    %s36 = scalar_select %p35, 0, %s34
    %s37 = sadd.s32 %s18, %s19
    %s38 = sadd.s32 %s32, %s28
    %s39 = ssub.s32 %s17, %s36
    %s40 = ssub.s32 %s37, %s38
    %s41 = sor.u32 %s39, %s40
    %p42 = scmp.eq.s32.totalorder %s41, 0
    %s44 = sadd.s32 %s43, 1
    %s45 = scalar_select %p42, %s43, %s44
    %p48 = pneg %p42
    %p49 = scmp.eq.s32.totalorder %s10, 1
    %p50 = por %p48, %p49
    %p51 = scmp.ne.s32.totalorder %s43, %s46
    %p52 = scmp.eq.s32.totalorder %s10, 0
    %p53 = por %p51, %p52
    %p54 = scmp.ne.s32.totalorder %s43, %s46
    %p55 = scmp.eq.s32.totalorder %s15, 1
    %p56 = por %p54, %p55
    %p57 = scmp.ne.s32.totalorder %s46, %s47
    %p58 = scmp.eq.s32.totalorder %s15, 0
    %p59 = por %p57, %p58
    %p60 = scmp.ne.s32.totalorder %s46, %s47
    %p61 = scmp.eq.s32.totalorder %s16, 1
    %p62 = por %p60, %p61
    %p64 = scmp.ne.s32.totalorder %s47, %s63
    %p65 = scmp.eq.s32.totalorder %s16, 0
    %p66 = por %p64, %p65
    %s67 = sadd.s32 %s18, %s19
    %s68 = sadd.s32 %s32, %s28
    %s69 = ssub.s32 %s17, %s36
    %s70 = ssub.s32 %s67, %s68
    %s71 = sor.u32 %s69, %s70
    %p72 = scmp.eq.s32.totalorder %s71, 0
    %s74 = sadd.s32 %s73, 1
    %s75 = scalar_select %p72, %s73, %s74
    %p78 = pneg %p72
    %p79 = scmp.eq.s32.totalorder %s10, 1
    %p80 = por %p78, %p79
    %p81 = scmp.ne.s32.totalorder %s73, %s76
    %p82 = scmp.eq.s32.totalorder %s10, 0
    %p83 = por %p81, %p82
    %p84 = scmp.ne.s32.totalorder %s73, %s76
    %p85 = scmp.eq.s32.totalorder %s15, 1
    %p86 = por %p84, %p85
    %p87 = scmp.ne.s32.totalorder %s76, %s77
    %p88 = scmp.eq.s32.totalorder %s15, 0
    %p89 = por %p87, %p88
    %p90 = scmp.ne.s32.totalorder %s76, %s77
    %p91 = scmp.eq.s32.totalorder %s16, 1
    %p92 = por %p90, %p91
    %p94 = scmp.ne.s32.totalorder %s77, %s93
    %p95 = scmp.eq.s32.totalorder %s16, 0
    %p96 = por %p94, %p95
    %s97 = ssub.s32 %s17, %s36
    %s98 = ssub.s32 %s18, %s32
    %s99 = sor.u32 %s97, %s98
    %p100 = scmp.eq.s32.totalorder %s99, 0
    %s102 = sadd.s32 %s101, 1
    %s103 = scalar_select %p100, %s101, %s102
    %p106 = pneg %p100
    %p107 = scmp.eq.s32.totalorder %s10, 1
    %p108 = por %p106, %p107
    %p109 = scmp.ne.s32.totalorder %s101, %s104
    %p110 = scmp.eq.s32.totalorder %s10, 0
    %p111 = por %p109, %p110
    %p112 = scmp.ne.s32.totalorder %s101, %s104
    %p113 = scmp.eq.s32.totalorder %s15, 1
    %p114 = por %p112, %p113
    %p115 = scmp.ne.s32.totalorder %s104, %s105
    %p116 = scmp.eq.s32.totalorder %s15, 0
    %p117 = por %p115, %p116
    %p118 = scmp.ne.s32.totalorder %s104, %s105
    %p119 = scmp.eq.s32.totalorder %s16, 1
    %p120 = por %p118, %p119
    %p122 = scmp.ne.s32.totalorder %s105, %s121
    %p123 = scmp.eq.s32.totalorder %s16, 0
    %p124 = por %p122, %p123
    %s125 = ssub.s32 %s17, %s36
    %s126 = ssub.s32 %s18, %s32
    %s127 = sor.u32 %s125, %s126
    %p128 = scmp.eq.s32.totalorder %s127, 0
    %s130 = sadd.s32 %s129, 1
    %s131 = scalar_select %p128, %s129, %s130
    %p134 = pneg %p128
    %p135 = scmp.eq.s32.totalorder %s10, 1
    %p136 = por %p134, %p135
    %p137 = scmp.ne.s32.totalorder %s129, %s132
    %p138 = scmp.eq.s32.totalorder %s10, 0
    %p139 = por %p137, %p138
    %p140 = scmp.ne.s32.totalorder %s129, %s132
    %p141 = scmp.eq.s32.totalorder %s15, 1
    %p142 = por %p140, %p141
    %p143 = scmp.ne.s32.totalorder %s132, %s133
    %p144 = scmp.eq.s32.totalorder %s15, 0
    %p145 = por %p143, %p144
    %p146 = scmp.ne.s32.totalorder %s132, %s133
    %p147 = scmp.eq.s32.totalorder %s16, 1
    %p148 = por %p146, %p147
    %p150 = scmp.ne.s32.totalorder %s133, %s149
    %p151 = scmp.eq.s32.totalorder %s16, 0
    %p152 = por %p150, %p151
    %p153 = scmp.le.s32.totalorder 1, %s10
    %p154 = scmp.lt.s32.totalorder %s10, 3
    %p155 = pnand %p153, %p154
    %p156 = pneg %p155
    // Predicated region
    $region9: #{_dice_loss_impl.1} parent=5 // pred_check
      _
    $region10: #{_dice_loss_impl.1} parent=5 // pred_check_branch
      %158 = sbr.rel (%p155) target = $region12
    $region11: #{_dice_loss_impl.1} parent=5 // pred_region
      %s159 = ssub.s32 %s10, 1
    $region12: #{_dice_loss_impl.1} parent=5 // pred_fallthru
      _
    %p160 = scmp.lt.s32.totalorder %s10, 2
    // Predicated region
    $region13: #{_dice_loss_impl.1} parent=5 // pred_check
      %p161 = pneg %p160
    $region14: #{_dice_loss_impl.1} parent=5 // pred_check_branch
      %163 = sbr.rel (%p161) target = $region16
    $region15: #{_dice_loss_impl.1} parent=5 // pred_region
      // Predicated region
      $region17: #{_dice_loss_impl.1} parent=15 // pred_check
        %p164 = pneg %p53
      $region18: #{_dice_loss_impl.1} parent=15 // pred_check_branch
        %166 = sbr.rel (%p164) target = $region20
      $region19: #{_dice_loss_impl.1} parent=15 // pred_region
        %s167 = sadd.s32 %s18, %s19
        %p168 = scmp.lt.s32.totalorder %s17, 1
        %s169 = scalar_select %p168, %s17, 1
        %p170 = scmp.lt.s32.totalorder %s167, 0
        %s171 = scalar_select %p170, %s167, 0
        %s172 = sadd.s32 %s171, %s169
        %s173 = scalar_lea.vmem %s0, %s172
        %s174 = sadd.s32 %s18, %s19
      $region20: #{_dice_loss_impl.1} parent=15 // pred_fallthru
        _
      // Predicated region
      $region21: #{_dice_loss_impl.1} parent=15 // pred_check
        %p175 = pneg %p83
      $region22: #{_dice_loss_impl.1} parent=15 // pred_check_branch
        %177 = sbr.rel (%p175) target = $region24
      $region23: #{_dice_loss_impl.1} parent=15 // pred_region
        %s178 = sadd.s32 %s18, %s19
        %p179 = scmp.lt.s32.totalorder %s17, 1
        %s180 = scalar_select %p179, %s17, 1
        %p181 = scmp.lt.s32.totalorder %s178, 0
        %s182 = scalar_select %p181, %s178, 0
        %s183 = smul.addr %s180, 4
        %s184 = sadd.s32 %s182, %s183
        %s185 = smul.addr %s184, 2
        %s186 = scalar_lea.vmem %s1, %s185
        %s187 = sadd.s32 %s18, %s19
      $region24: #{_dice_loss_impl.1} parent=15 // pred_fallthru
        _
    $region16: #{_dice_loss_impl.1} parent=5 // pred_fallthru
      _
    %p188 = scmp.le.s32.totalorder 1, %s10
    %p189 = scmp.lt.s32.totalorder %s10, 3
    %p190 = pnand %p188, %p189
    %p191 = pneg %p190
    // Predicated region
    $region25: #{_dice_loss_impl.1} parent=5 // pred_check
      _
    $region26: #{_dice_loss_impl.1} parent=5 // pred_check_branch
      %193 = sbr.rel (%p190) target = $region28
    $region27: #{_dice_loss_impl.1} parent=5 // pred_region
      %s194 = ssub.s32 %s10, 1
      %s195 = sadd.s32 %s21, %s22
      %p196 = scmp.lt.s32.totalorder %s20, 1
      %s197 = scalar_select %p196, %s20, 1
      %p198 = scmp.lt.s32.totalorder %s195, 0
      %s199 = scalar_select %p198, %s195, 0
      %s200 = sadd.s32 %s199, %s197
      %s201 = scalar_lea.vmem %s0, %s200
      %p202 = pneg %p59
      %p203 = pneg %p56
      %s204 = sadd.s32 %s21, %s22
      %p205 = scmp.lt.s32.totalorder %s20, 1
      %s206 = scalar_select %p205, %s20, 1
      %p207 = scmp.lt.s32.totalorder %s204, 0
      %s208 = scalar_select %p207, %s204, 0
      %s209 = smul.addr %s206, 4
      %s210 = sadd.s32 %s208, %s209
      %s211 = smul.addr %s210, 2
      %s212 = scalar_lea.vmem %s1, %s211
      %p213 = pneg %p89
      %p214 = pneg %p86
      %p215 = pneg %p117
      %p216 = pneg %p114
      %p217 = scmp.lt.s32.totalorder %s20, 1
      %s218 = scalar_select %p217, %s20, 1
      %p219 = scmp.lt.s32.totalorder %s21, 0
      %s220 = scalar_select %p219, %s21, 0
      %s221 = sadd.s32 %s220, %s218
      %s222 = smul.addr %s221, 4
      %s223 = scalar_lea.vmem %s2, %s222
      %p224 = pneg %p145
      %p225 = pneg %p142
      %p226 = scmp.lt.s32.totalorder %s20, 1
      %s227 = scalar_select %p226, %s20, 1
      %p228 = scmp.lt.s32.totalorder %s21, 0
      %s229 = scalar_select %p228, %s21, 0
      %s230 = sadd.s32 %s229, %s227
      %s231 = smul.addr %s230, 4
      %s232 = scalar_lea.vmem %s3, %s231
      %s233 = sadd.s32 %s21, %s22
      %p234 = scmp.lt.s32.totalorder %s20, 1
      %s235 = scalar_select %p234, %s20, 1
      %p236 = scmp.lt.s32.totalorder %s233, 0
      %s237 = scalar_select %p236, %s233, 0
      %s238 = sadd.s32 %s237, %s235
      %s239 = scalar_lea.vmem %s0, %s238
      %s240 = sadd.s32 %s21, %s22
      %s241 = sadd.s32 %s21, %s22
      %p242 = scmp.lt.s32.totalorder %s20, 1
      %s243 = scalar_select %p242, %s20, 1
      %p244 = scmp.lt.s32.totalorder %s241, 0
      %s245 = scalar_select %p244, %s241, 0
      %s246 = smul.addr %s243, 4
      %s247 = sadd.s32 %s245, %s246
      %s248 = smul.addr %s247, 2
      %s249 = scalar_lea.vmem %s1, %s248
      %s250 = sadd.s32 %s21, %s22
      %p251 = scmp.lt.s32.totalorder %s20, 1
      %s252 = scalar_select %p251, %s20, 1
      %p253 = scmp.lt.s32.totalorder %s21, 0
      %s254 = scalar_select %p253, %s21, 0
      %s255 = sadd.s32 %s254, %s252
      %s256 = smul.addr %s255, 4
      %s257 = scalar_lea.vmem %s2, %s256
      %p258 = scmp.lt.s32.totalorder %s20, 1
      %s259 = scalar_select %p258, %s20, 1
      %p260 = scmp.lt.s32.totalorder %s21, 0
      %s261 = scalar_select %p260, %s21, 0
      %s262 = sadd.s32 %s261, %s259
      %s263 = smul.addr %s262, 4
      %s264 = scalar_lea.vmem %s3, %s263
      %p265 = scmp.eq.s32.totalorder %s22, 0
      // Predicated region
      $region29: #{_dice_loss_impl.1} parent=27 // pred_check
        %p266 = pneg %p265
      $region30: #{_dice_loss_impl.1} parent=27 // pred_check_branch
        %268 = sbr.rel (%p266) target = $region32
      $region31: #{_dice_loss_impl.1} parent=27 // pred_region
        %269 = vst [vmem:[#allocation2] sm:$0xf] 0.0
        %270 = vst [vmem:[#allocation3] sm:$0xf] 0.0
      $region32: #{_dice_loss_impl.1} parent=27 // pred_fallthru
        _
      %v271 = vld [vmem:[%s249] sm:$0x3]
      %v272 = vld [vmem:[%s249 + $0x2] sm:$0x3]
      %v273 = vld [vmem:[%s249 + $0x4] sm:$0x3]
      %v274 = vld [vmem:[%s249 + $0x6] sm:$0x3]
      %v275 = vld [vmem:[%s239] sm:$0x1]
      %v276 = vunpack.c.0.s8 %v275
      %vm277 = vcmask 1041408
      %v278 = vsel %vm277, %v271, -inf
      %v279 = vsel %vm277, %v272, -inf
      %v280 = vsel %vm277, %v273, -inf
      %v281 = vsel %vm277, %v274, -inf
      %v282 = vmax.f32 %v278, %v279
      %v283 = vmax.f32 %v280, %v281
      %v284 = vmax.f32 %v282, %v283
      %v285 = vsub.f32 %v271, %v284
      %v286 = vsub.f32 %v272, %v284
      %v287 = vsub.f32 %v273, %v284
      %v288 = vsub.f32 %v274, %v284
      %v289 = vmul.f32 %v285, 1.442695
      %v290 = vpow.pop %v289
      %v291 = vmul.f32 %v286, 1.442695
      %v292 = vpow.pop %v291
      %v293 = vmul.f32 %v287, 1.442695
      %v294 = vpow.pop %v293
      %v295 = vmul.f32 %v288, 1.442695
      %v296 = vpow.pop %v295
      %v297 = vsel %vm277, %v290, 0.0
      %v298 = vsel %vm277, %v292, 0.0
      %v299 = vadd.f32 %v297, %v298
      %v300 = vsel %vm277, %v294, 0.0
      %v301 = vadd.f32 %v299, %v300
      %v302 = vsel %vm277, %v296, 0.0
      %v303 = vadd.f32 %v301, %v302
      %v304 = vrcp.pop %v303
      %v305 = vmul.f32 1.0, %v304
      %v306 = vmul.f32 %v290, %v305
      %v307 = vmul.f32 %v292, %v305
      %v308 = vmul.f32 %v294, %v305
      %v309 = vmul.f32 %v296, %v305
      %vm310 = vcmp.eq.s32.totalorder %v276, 0
      %v311 = vsel %vm310, 1, 0
      %v312 = vcvt.s32.f32 %v311
      %v313 = vld [vmem:[#allocation2] sm:$0x1]
      %v314 = vmul.f32 %v306, %v312
      %v315 = vsel %vm277, %v314, 0.0
      %v316 = vrot.slane %v315, 4
      %v317 = vadd.f32 %v315, %v316
      %v318 = vrot.slane %v317, 2
      %v319 = vadd.f32 %v317, %v318
      %v320 = vrot.slane %v319, 1
      %v321 = vadd.f32 %v319, %v320
      %v322 = vadd.f32 %v313, %v321
      %323 = vst [vmem:[#allocation2] sm:$0x1] %v322
      %v324 = vld [vmem:[#allocation3] sm:$0x1]
      %v325 = vadd.f32 %v306, %v312
      %v326 = vsel %vm277, %v325, 0.0
      %v327 = vrot.slane %v326, 4
      %v328 = vadd.f32 %v326, %v327
      %v329 = vrot.slane %v328, 2
      %v330 = vadd.f32 %v328, %v329
      %v331 = vrot.slane %v330, 1
      %v332 = vadd.f32 %v330, %v331
      %v333 = vadd.f32 %v324, %v332
      %334 = vst [vmem:[#allocation3] sm:$0x1] %v333
      %vm335 = vcmp.eq.s32.totalorder %v276, 1
      %v336 = vsel %vm335, 1, 0
      %v337 = vcvt.s32.f32 %v336
      %v338 = vld [vmem:[#allocation2 + $0x1] sm:$0x1]
      %v339 = vmul.f32 %v307, %v337
      %v340 = vsel %vm277, %v339, 0.0
      %v341 = vrot.slane %v340, 4
      %v342 = vadd.f32 %v340, %v341
      %v343 = vrot.slane %v342, 2
      %v344 = vadd.f32 %v342, %v343
      %v345 = vrot.slane %v344, 1
      %v346 = vadd.f32 %v344, %v345
      %v347 = vadd.f32 %v338, %v346
      %348 = vst [vmem:[#allocation2 + $0x1] sm:$0x1] %v347
      %v349 = vld [vmem:[#allocation3 + $0x1] sm:$0x1]
      %v350 = vadd.f32 %v307, %v337
      %v351 = vsel %vm277, %v350, 0.0
      %v352 = vrot.slane %v351, 4
      %v353 = vadd.f32 %v351, %v352
      %v354 = vrot.slane %v353, 2
      %v355 = vadd.f32 %v353, %v354
      %v356 = vrot.slane %v355, 1
      %v357 = vadd.f32 %v355, %v356
      %v358 = vadd.f32 %v349, %v357
      %359 = vst [vmem:[#allocation3 + $0x1] sm:$0x1] %v358
      %vm360 = vcmp.eq.s32.totalorder %v276, 2
      %v361 = vsel %vm360, 1, 0
      %v362 = vcvt.s32.f32 %v361
      %v363 = vld [vmem:[#allocation2 + $0x2] sm:$0x1]
      %v364 = vmul.f32 %v308, %v362
      %v365 = vsel %vm277, %v364, 0.0
      %v366 = vrot.slane %v365, 4
      %v367 = vadd.f32 %v365, %v366
      %v368 = vrot.slane %v367, 2
      %v369 = vadd.f32 %v367, %v368
      %v370 = vrot.slane %v369, 1
      %v371 = vadd.f32 %v369, %v370
      %v372 = vadd.f32 %v363, %v371
      %373 = vst [vmem:[#allocation2 + $0x2] sm:$0x1] %v372
      %v374 = vld [vmem:[#allocation3 + $0x2] sm:$0x1]
      %v375 = vadd.f32 %v308, %v362
      %v376 = vsel %vm277, %v375, 0.0
      %v377 = vrot.slane %v376, 4
      %v378 = vadd.f32 %v376, %v377
      %v379 = vrot.slane %v378, 2
      %v380 = vadd.f32 %v378, %v379
      %v381 = vrot.slane %v380, 1
      %v382 = vadd.f32 %v380, %v381
      %v383 = vadd.f32 %v374, %v382
      %384 = vst [vmem:[#allocation3 + $0x2] sm:$0x1] %v383
      %vm385 = vcmp.eq.s32.totalorder %v276, 3
      %v386 = vsel %vm385, 1, 0
      %v387 = vcvt.s32.f32 %v386
      %v388 = vld [vmem:[#allocation2 + $0x3] sm:$0x1]
      %v389 = vmul.f32 %v309, %v387
      %v390 = vsel %vm277, %v389, 0.0
      %v391 = vrot.slane %v390, 4
      %v392 = vadd.f32 %v390, %v391
      %v393 = vrot.slane %v392, 2
      %v394 = vadd.f32 %v392, %v393
      %v395 = vrot.slane %v394, 1
      %v396 = vadd.f32 %v394, %v395
      %v397 = vadd.f32 %v388, %v396
      %398 = vst [vmem:[#allocation2 + $0x3] sm:$0x1] %v397
      %v399 = vld [vmem:[#allocation3 + $0x3] sm:$0x1]
      %v400 = vadd.f32 %v309, %v387
      %v401 = vsel %vm277, %v400, 0.0
      %v402 = vrot.slane %v401, 4
      %v403 = vadd.f32 %v401, %v402
      %v404 = vrot.slane %v403, 2
      %v405 = vadd.f32 %v403, %v404
      %v406 = vrot.slane %v405, 1
      %v407 = vadd.f32 %v405, %v406
      %v408 = vadd.f32 %v399, %v407
      %409 = vst [vmem:[#allocation3 + $0x3] sm:$0x1] %v408
      // Predicated region
      $region33: #{_dice_loss_impl.1} parent=27 // pred_check
        %p410 = pneg %p265
      $region34: #{_dice_loss_impl.1} parent=27 // pred_check_branch
        %412 = sbr.rel (%p410) target = $region36
      $region35: #{_dice_loss_impl.1} parent=27 // pred_region
        %v413 = vld [vmem:[#allocation2] sm:$0xf]
        %vm414 = vcmask 1043456
        %v415 = vsel %vm414, %v413, 0.0
        %416 = vadd.xlane.f32.xlu0 %v415
        %v417 = vpop.xlane.xlu0 %416
        %vm418 = vcmask 3072
        %419 = vst.msk [vmem:[%s257] sm:$0xf] %vm418, %v417
        %v420 = vld [vmem:[#allocation3] sm:$0xf]
        %v421 = vsel %vm414, %v420, 0.0
        %422 = vadd.xlane.f32.xlu0 %v421
        %v423 = vpop.xlane.xlu0 %422
        %424 = vst.msk [vmem:[%s264] sm:$0xf] %vm418, %v423
      $region36: #{_dice_loss_impl.1} parent=27 // pred_fallthru
        _
      %p425 = scmp.lt.s32.totalorder %s20, 1
      %s426 = scalar_select %p425, %s20, 1
      %p427 = scmp.lt.s32.totalorder %s21, 0
      %s428 = scalar_select %p427, %s21, 0
      %s429 = sadd.s32 %s428, %s426
      %s430 = smul.addr %s429, 4
      %s431 = scalar_lea.vmem %s2, %s430
      %p432 = scmp.lt.s32.totalorder %s20, 1
      %s433 = scalar_select %p432, %s20, 1
      %p434 = scmp.lt.s32.totalorder %s21, 0
      %s435 = scalar_select %p434, %s21, 0
      %s436 = sadd.s32 %s435, %s433
      %s437 = smul.addr %s436, 4
      %s438 = scalar_lea.vmem %s3, %s437
      // Predicated region
      $region37: #{_dice_loss_impl.1} parent=27 // pred_check
        %p439 = pneg %p114
      $region38: #{_dice_loss_impl.1} parent=27 // pred_check_branch
        %441 = sbr.rel (%p439) target = $region40
      $region39: #{_dice_loss_impl.1} parent=27 // pred_region
        _
      $region40: #{_dice_loss_impl.1} parent=27 // pred_fallthru
        _
      // Predicated region
      $region41: #{_dice_loss_impl.1} parent=27 // pred_check
        %p442 = pneg %p142
      $region42: #{_dice_loss_impl.1} parent=27 // pred_check_branch
        %444 = sbr.rel (%p442) target = $region44
      $region43: #{_dice_loss_impl.1} parent=27 // pred_region
        _
      $region44: #{_dice_loss_impl.1} parent=27 // pred_fallthru
        _
    $region28: #{_dice_loss_impl.1} parent=5 // pred_fallthru
      _
    %p445 = scmp.le.s32.totalorder 2, %s10
    // Predicated region
    $region45: #{_dice_loss_impl.1} parent=5 // pred_check
      %p446 = pneg %p445
    $region46: #{_dice_loss_impl.1} parent=5 // pred_check_branch
      %448 = sbr.rel (%p446) target = $region48
    $region47: #{_dice_loss_impl.1} parent=5 // pred_region
      %s449 = ssub.s32 %s10, 2
      // Predicated region
      $region49: #{_dice_loss_impl.1} parent=47 // pred_check
        %p450 = pneg %p120
      $region50: #{_dice_loss_impl.1} parent=47 // pred_check_branch
        %452 = sbr.rel (%p450) target = $region52
      $region51: #{_dice_loss_impl.1} parent=47 // pred_region
        %p453 = scmp.lt.s32.totalorder %s23, 1
        %s454 = scalar_select %p453, %s23, 1
        %p455 = scmp.lt.s32.totalorder %s24, 0
        %s456 = scalar_select %p455, %s24, 0
        %s457 = sadd.s32 %s456, %s454
        %s458 = smul.addr %s457, 4
        %s459 = scalar_lea.vmem %s2, %s458
      $region52: #{_dice_loss_impl.1} parent=47 // pred_fallthru
        _
      // Predicated region
      $region53: #{_dice_loss_impl.1} parent=47 // pred_check
        %p460 = pneg %p148
      $region54: #{_dice_loss_impl.1} parent=47 // pred_check_branch
        %462 = sbr.rel (%p460) target = $region56
      $region55: #{_dice_loss_impl.1} parent=47 // pred_region
        %p463 = scmp.lt.s32.totalorder %s23, 1
        %s464 = scalar_select %p463, %s23, 1
        %p465 = scmp.lt.s32.totalorder %s24, 0
        %s466 = scalar_select %p465, %s24, 0
        %s467 = sadd.s32 %s466, %s464
        %s468 = smul.addr %s467, 4
        %s469 = scalar_lea.vmem %s3, %s468
      $region56: #{_dice_loss_impl.1} parent=47 // pred_fallthru
        _
    $region48: #{_dice_loss_impl.1} parent=5 // pred_fallthru
      _
  $region6: #{_dice_loss_impl.1} parent=0 // loop_footer
    %s14 = sadd.s32 1, %s10
  $region7: #{_dice_loss_impl.1} parent=0 // loop_footer_branch
    %9 = sbr.rel target = $region3
  $region8: #{_dice_loss_impl.1} parent=0 // loop_exit
    _

</llo_original>
